<compile_context>
chip_gen: v7x
topology: tpu7x:2x2x1
jax: 0.10.0
libtpu: 0.0.40
codegen_flags: <defaults>
</compile_context>

<pallas_src>
import jax
import jax.numpy as jnp
from jax.experimental import pallas as pl
from jax.experimental.pallas import tpu as pltpu

EMB = 16        # embedding_dimension
HID = 128       # hidden_dimension
OUT = 3         # out_dim
OUTP = 128      # lane-padded output width (dense stores; sliced to OUT in wrapper)
NEG_SLOPE = 0.01  # nn.LeakyReLU default

TM = 256        # row tile (node dimension)
TK = 256        # aggregation K tile (neighbor dimension)

VMEM_LIMIT = 32 * 1024 * 1024  # explicit scoped-VMEM budget (safe on v5e/v6e/v7x)


def _leaky_relu(x):
    return jnp.where(x >= 0, x, NEG_SLOPE * x)


def _round_up(n, m):
    return ((n + m - 1) // m) * m


# ----------------------------------------------------------------------------
# Stage 1: input projection for main + mask branches (single merged K=16 matmul),
#          mask branch finished through the lane-padded output head.
# ----------------------------------------------------------------------------
def input_kernel(mf_ref, ft_ref, w_in_ref, b_in_ref, w_out_ref, b_out_ref,
                 x0_ref, mask_ref):
    mf = mf_ref[...]                                   # [TM, EMB] f32
    dlt = ft_ref[...] - mf                             # [TM, EMB] f32
    both = jnp.concatenate([mf, dlt], axis=0)          # [2*TM, EMB]
    h = _leaky_relu(
        jnp.dot(both, w_in_ref[...], preferred_element_type=jnp.float32)
        + b_in_ref[...])                               # [2*TM, HID]
    tm = mf_ref.shape[0]
    x0_ref[...] = h[:tm].astype(jnp.bfloat16)          # main-branch activations (bf16)
    mask_ref[...] = (jnp.dot(h[tm:].astype(jnp.bfloat16), w_out_ref[...],
                             preferred_element_type=jnp.float32)
                     + b_out_ref[...])                 # [TM, OUTP] f32


# ----------------------------------------------------------------------------
# Stage 2: one SAGEConv layer. Mean aggregation = tiled adj @ x accumulated in a
#          f32 VMEM scratch; lin_l/lin_r fused as a single K=2*HID matmul.
# ----------------------------------------------------------------------------
def sage_layer_kernel(adj_ref, xk_ref, xs_ref, w_ref, b_ref, out_ref, acc_ref):
    k = pl.program_id(1)

    @pl.when(k == 0)
    def _():
        acc_ref[...] = jnp.zeros_like(acc_ref)

    acc_ref[...] += jnp.dot(adj_ref[...], xk_ref[...],
                            preferred_element_type=jnp.float32)

    @pl.when(k == pl.num_programs(1) - 1)
    def _():
        feats = jnp.concatenate(
            [acc_ref[...].astype(jnp.bfloat16), xs_ref[...]], axis=-1)  # [TM, 2*HID]
        out_ref[...] = (jnp.dot(feats, w_ref[...],
                                preferred_element_type=jnp.float32)
                        + b_ref[...]).astype(out_ref.dtype)


# ----------------------------------------------------------------------------
# Stage 3: SAGEConv2 fused with linear_output2 (lane-padded) and the mask multiply.
# ----------------------------------------------------------------------------
def sage_final_kernel(adj_ref, xk_ref, xs_ref, w_ref, b_ref,
                      w_out_ref, b_out_ref, mask_ref, out_ref, acc_ref):
    k = pl.program_id(1)

    @pl.when(k == 0)
    def _():
        acc_ref[...] = jnp.zeros_like(acc_ref)

    acc_ref[...] += jnp.dot(adj_ref[...], xk_ref[...],
                            preferred_element_type=jnp.float32)

    @pl.when(k == pl.num_programs(1) - 1)
    def _():
        feats = jnp.concatenate(
            [acc_ref[...].astype(jnp.bfloat16), xs_ref[...]], axis=-1)  # [TM, 2*HID]
        x2 = (jnp.dot(feats, w_ref[...], preferred_element_type=jnp.float32)
              + b_ref[...])                                             # [TM, HID] f32
        y = (jnp.dot(x2.astype(jnp.bfloat16), w_out_ref[...],
                     preferred_element_type=jnp.float32)
             + b_out_ref[...])                                          # [TM, OUTP]
        out_ref[...] = y * mask_ref[...]


# ----------------------------------------------------------------------------
# Wrapper
# ----------------------------------------------------------------------------
def sage_forward(mask_feature, feature, edge_index, edge_type, params):
    del edge_type  # unused by the reference forward
    N = mask_feature.shape[0]
    n_pad = _round_up(N, max(TM, TK))
    nr, nk = n_pad // TM, n_pad // TK

    mf = jnp.zeros((n_pad, EMB), jnp.float32).at[:N].set(mask_feature.astype(jnp.float32))
    ft = jnp.zeros((n_pad, EMB), jnp.float32).at[:N].set(feature.astype(jnp.float32))

    # Dense mean-aggregation operator A_norm[i, j] = (#edges j->i) / in_degree(i),
    # row-normalized like PyG SAGEConv mean aggregation. Stored in bf16 for the MXU.
    # TODO(synk): for sparse graphs (E << N^2) replace the dense adjacency with a
    # CSR gather path (scalar-prefetch neighbor offsets + manual double-buffered DMA).
    src, dst = edge_index[0], edge_index[1]
    A = jnp.zeros((n_pad, n_pad), jnp.float32).at[dst, src].add(1.0)
    deg = A.sum(axis=1, keepdims=True)
    adj = (A / jnp.maximum(deg, 1.0)).astype(jnp.bfloat16)

    cp_rows = pltpu.CompilerParams(dimension_semantics=("parallel",),
                                   vmem_limit_bytes=VMEM_LIMIT)
    cp_tiled = pltpu.CompilerParams(dimension_semantics=("parallel", "arbitrary"),
                                    vmem_limit_bytes=VMEM_LIMIT)

    const1 = lambda i: (0, 0)
    const2 = lambda i, k: (0, 0)

    # ---- stage 1: linear_relu_input (main + mask branches), mask head ----
    x0, mask = pl.pallas_call(
        input_kernel,
        grid=(nr,),
        in_specs=[
            pl.BlockSpec((TM, EMB), lambda i: (i, 0)),   # mask_feature rows
            pl.BlockSpec((TM, EMB), lambda i: (i, 0)),   # feature rows
            pl.BlockSpec((EMB, HID), const1),            # W_in (resident)
            pl.BlockSpec((1, HID), const1),              # b_in
            pl.BlockSpec((HID, OUTP), const1),           # W_out (lane-padded)
            pl.BlockSpec((1, OUTP), const1),             # b_out (lane-padded)
        ],
        out_specs=[
            pl.BlockSpec((TM, HID), lambda i: (i, 0)),   # x0 (bf16)
            pl.BlockSpec((TM, OUTP), lambda i: (i, 0)),  # mask branch output (f32)
        ],
        out_shape=[
            jax.ShapeDtypeStruct((n_pad, HID), jnp.bfloat16),
            jax.ShapeDtypeStruct((n_pad, OUTP), jnp.float32),
        ],
        compiler_params=cp_rows,
    )(mf, ft, params["w_in_t"], params["b_in"],
      params["w_out_pad"], params["b_out_pad"])

    # ---- stage 2: SAGEConv1 ----
    x1 = pl.pallas_call(
        sage_layer_kernel,
        grid=(nr, nk),
        in_specs=[
            pl.BlockSpec((TM, TK), lambda i, k: (i, k)),    # adj tile
            pl.BlockSpec((TK, HID), lambda i, k: (k, 0)),   # x rows for aggregation
            pl.BlockSpec((TM, HID), lambda i, k: (i, 0)),   # self rows
            pl.BlockSpec((2 * HID, HID), const2),           # stacked [W_l; W_r] (resident)
            pl.BlockSpec((1, HID), const2),                 # b_l
        ],
        out_specs=pl.BlockSpec((TM, HID), lambda i, k: (i, 0)),
        out_shape=jax.ShapeDtypeStruct((n_pad, HID), jnp.bfloat16),
        scratch_shapes=[pltpu.VMEM((TM, HID), jnp.float32)],
        compiler_params=cp_tiled,
    )(adj, x0, x0, params["w1_stack"], params["b1l"])

    # F.dropout: identity in eval mode (training=False)

    # ---- stage 3: SAGEConv2 + linear_output2 + elementwise mask multiply ----
    out = pl.pallas_call(
        sage_final_kernel,
        grid=(nr, nk),
        in_specs=[
            pl.BlockSpec((TM, TK), lambda i, k: (i, k)),
            pl.BlockSpec((TK, HID), lambda i, k: (k, 0)),
            pl.BlockSpec((TM, HID), lambda i, k: (i, 0)),
            pl.BlockSpec((2 * HID, HID), const2),
            pl.BlockSpec((1, HID), const2),
            pl.BlockSpec((HID, OUTP), const2),
            pl.BlockSpec((1, OUTP), const2),
            pl.BlockSpec((TM, OUTP), lambda i, k: (i, 0)),  # mask branch rows
        ],
        out_specs=pl.BlockSpec((TM, OUTP), lambda i, k: (i, 0)),
        out_shape=jax.ShapeDtypeStruct((n_pad, OUTP), jnp.float32),
        scratch_shapes=[pltpu.VMEM((TM, HID), jnp.float32)],
        compiler_params=cp_tiled,
    )(adj, x1, x1, params["w2_stack"], params["b2l"],
      params["w_out_pad"], params["b_out_pad"], mask)

    return out[:N, :OUT]


def init_params(key):
    """Deterministic PyTorch-style (kaiming-uniform bound = 1/sqrt(fan_in)) init,
    packed into kernel-ready layout (stacked SAGE weights, lane-padded output head)."""
    keys = jax.random.split(key, 10)

    def lin_w(k, fin, fout):
        bound = 1.0 / jnp.sqrt(jnp.float32(fin))
        return jax.random.uniform(k, (fout, fin), jnp.float32, -bound, bound).T  # [fin,fout]

    def lin_b(k, fin, fout):
        bound = 1.0 / jnp.sqrt(jnp.float32(fin))
        return jax.random.uniform(k, (1, fout), jnp.float32, -bound, bound)

    w_in_t = lin_w(keys[0], EMB, HID)
    b_in = lin_b(keys[1], EMB, HID)
    w1l_t = lin_w(keys[2], HID, HID)
    b1l = lin_b(keys[3], HID, HID)
    w1r_t = lin_w(keys[4], HID, HID)
    w2l_t = lin_w(keys[5], HID, HID)
    b2l = lin_b(keys[6], HID, HID)
    w2r_t = lin_w(keys[7], HID, HID)
    w_out_t = lin_w(keys[8], HID, OUT)
    b_out = lin_b(keys[9], HID, OUT)

    w_out_pad = jnp.zeros((HID, OUTP), jnp.float32).at[:, :OUT].set(w_out_t)
    b_out_pad = jnp.zeros((1, OUTP), jnp.float32).at[:, :OUT].set(b_out)

    return {
        # linear_relu_input: Linear(EMB, HID) -- small K, kept f32
        "w_in_t": w_in_t, "b_in": b_in,
        # sage1/sage2: [W_l; W_r] stacked along K -> single K=256 matmul, bf16 for MXU
        "w1_stack": jnp.concatenate([w1l_t, w1r_t], axis=0).astype(jnp.bfloat16),
        "b1l": b1l,
        "w2_stack": jnp.concatenate([w2l_t, w2r_t], axis=0).astype(jnp.bfloat16),
        "b2l": b2l,
        # linear_output2: Linear(HID, OUT), zero-padded to 128 output lanes
        "w_out_pad": w_out_pad.astype(jnp.bfloat16),
        "b_out_pad": b_out_pad,
        # linear_relu_output1 exists in __init__ but is unused in forward -> not materialized
    }


if __name__ == "__main__":
    key = jax.random.PRNGKey(0)
    kp, km, kf, ke = jax.random.split(key, 4)

    N, E = 8, 16  # small synthetic graph
    params = init_params(kp)
    mask_feature = jax.random.normal(km, (N, EMB), jnp.float32)
    feature = jax.random.normal(kf, (N, EMB), jnp.float32)
    edge_index = jax.random.randint(ke, (2, E), 0, N, dtype=jnp.int32)
    edge_type = jnp.zeros((E,), jnp.int32)  # unused by the forward, kept for signature parity

    out = sage_forward(mask_feature, feature, edge_index, edge_type, params)
    out = jax.block_until_ready(out)
    assert out.shape == (N, OUT) and out.dtype == jnp.float32
    print("KERNEL_OK")
</pallas_src>

<mosaic_0001>
module attributes {stable_mosaic.version = 11 : i64} {
  func.func @input_kernel(%arg0: i32, %arg1: memref<256x16xf32, #tpu.memory_space<vmem>>, %arg2: memref<256x16xf32, #tpu.memory_space<vmem>>, %arg3: memref<16x128xf32, #tpu.memory_space<vmem>>, %arg4: memref<1x128xf32, #tpu.memory_space<vmem>>, %arg5: memref<128x128xbf16, #tpu.memory_space<vmem>>, %arg6: memref<1x128xf32, #tpu.memory_space<vmem>>, %arg7: memref<256x128xbf16, #tpu.memory_space<vmem>>, %arg8: memref<256x128xf32, #tpu.memory_space<vmem>>) attributes {dimension_semantics = [#tpu.dimension_semantics<parallel>], iteration_bounds = array<i64: 1>, scalar_prefetch = 0 : i64, scratch_operands = 0 : i64, tpu.core_type = #tpu.core_type<tc>, window_params = [{transform_indices = @transform_0, window_bounds = array<i64: 256, 16>}, {transform_indices = @transform_1, window_bounds = array<i64: 256, 16>}, {pipeline_mode = #tpu.pipeline_mode<synchronous>, transform_indices = @transform_2, window_bounds = array<i64: 16, 128>}, {pipeline_mode = #tpu.pipeline_mode<synchronous>, transform_indices = @transform_3, window_bounds = array<i64: 1, 128>}, {pipeline_mode = #tpu.pipeline_mode<synchronous>, transform_indices = @transform_4, window_bounds = array<i64: 128, 128>}, {pipeline_mode = #tpu.pipeline_mode<synchronous>, transform_indices = @transform_5, window_bounds = array<i64: 1, 128>}, {transform_indices = @transform_6, window_bounds = array<i64: 256, 128>}, {transform_indices = @transform_7, window_bounds = array<i64: 256, 128>}]} {
    %c0 = arith.constant 0 : index
    %c0_0 = arith.constant 0 : index
    %0 = vector.load %arg1[%c0, %c0_0] : memref<256x16xf32, #tpu.memory_space<vmem>>, vector<256x16xf32>
    %c0_1 = arith.constant 0 : index
    %c0_2 = arith.constant 0 : index
    %1 = vector.load %arg2[%c0_1, %c0_2] : memref<256x16xf32, #tpu.memory_space<vmem>>, vector<256x16xf32>
    %2 = arith.subf %1, %0 : vector<256x16xf32>
    %3 = tpu.concatenate %0, %2 in 0 : vector<256x16xf32>, vector<256x16xf32> -> vector<512x16xf32>
    %c0_3 = arith.constant 0 : index
    %c0_4 = arith.constant 0 : index
    %4 = vector.load %arg3[%c0_3, %c0_4] : memref<16x128xf32, #tpu.memory_space<vmem>>, vector<16x128xf32>
    %cst = arith.constant dense<0.000000e+00> : vector<512x128xf32>
    %5 = tpu.matmul %3, %4, %cst {dimension_numbers = #tpu.dot_dimension_numbers<[1], [0], [0], [1], [0, 0, 1, 1], [], []>} : vector<512x16xf32>, vector<16x128xf32>, vector<512x128xf32> -> vector<512x128xf32>
    %c0_5 = arith.constant 0 : index
    %c0_6 = arith.constant 0 : index
    %6 = vector.load %arg4[%c0_5, %c0_6] : memref<1x128xf32, #tpu.memory_space<vmem>>, vector<1x128xf32>
    %7 = vector.broadcast %6 : vector<1x128xf32> to vector<512x128xf32>
    %8 = arith.addf %5, %7 : vector<512x128xf32>
    %cst_7 = arith.constant 0.000000e+00 : f32
    %9 = vector.broadcast %cst_7 : f32 to vector<512x128xf32>
    %10 = arith.cmpf oge, %8, %9 : vector<512x128xf32>
    %cst_8 = arith.constant 0.00999999977 : f32
    %11 = vector.broadcast %cst_8 : f32 to vector<512x128xf32>
    %12 = arith.mulf %11, %8 : vector<512x128xf32>
    %13 = arith.select %10, %8, %12 : vector<512x128xi1>, vector<512x128xf32>
    %14 = vector.extract_strided_slice %13 {offsets = [0, 0], sizes = [256, 128], strides = [1, 1]} : vector<512x128xf32> to vector<256x128xf32>
    %15 = arith.truncf %14 : vector<256x128xf32> to vector<256x128xbf16>
    %c0_9 = arith.constant 0 : index
    %c0_10 = arith.constant 0 : index
    %16 = vector.load %arg7[%c0_9, %c0_10] : memref<256x128xbf16, #tpu.memory_space<vmem>>, vector<256x128xbf16>
    tpu.vector_store %arg7[%c0_9, %c0_10], %15 {strides = array<i32>} : memref<256x128xbf16, #tpu.memory_space<vmem>>, vector<256x128xbf16>,
    %17 = vector.extract_strided_slice %13 {offsets = [256, 0], sizes = [256, 128], strides = [1, 1]} : vector<512x128xf32> to vector<256x128xf32>
    %18 = arith.truncf %17 : vector<256x128xf32> to vector<256x128xbf16>
    %c0_11 = arith.constant 0 : index
    %c0_12 = arith.constant 0 : index
    %19 = vector.load %arg5[%c0_11, %c0_12] : memref<128x128xbf16, #tpu.memory_space<vmem>>, vector<128x128xbf16>
    %cst_13 = arith.constant dense<0.000000e+00> : vector<256x128xf32>
    %20 = tpu.matmul %18, %19, %cst_13 {dimension_numbers = #tpu.dot_dimension_numbers<[1], [0], [0], [1], [0, 0, 1, 1], [], []>} : vector<256x128xbf16>, vector<128x128xbf16>, vector<256x128xf32> -> vector<256x128xf32>
    %c0_14 = arith.constant 0 : index
    %c0_15 = arith.constant 0 : index
    %21 = vector.load %arg6[%c0_14, %c0_15] : memref<1x128xf32, #tpu.memory_space<vmem>>, vector<1x128xf32>
    %22 = vector.broadcast %21 : vector<1x128xf32> to vector<256x128xf32>
    %23 = arith.addf %20, %22 : vector<256x128xf32>
    %c0_16 = arith.constant 0 : index
    %c0_17 = arith.constant 0 : index
    %24 = vector.load %arg8[%c0_16, %c0_17] : memref<256x128xf32, #tpu.memory_space<vmem>>, vector<256x128xf32>
    tpu.vector_store %arg8[%c0_16, %c0_17], %23 {strides = array<i32>} : memref<256x128xf32, #tpu.memory_space<vmem>>, vector<256x128xf32>,
    return
  }
  func.func @transform_0(%arg0: i32) -> (i32, i32) {
    %c0_i32 = arith.constant 0 : i32
    %c0_i32_0 = arith.constant 0 : i32
    return %arg0, %c0_i32 : i32, i32
  }
  func.func @transform_1(%arg0: i32) -> (i32, i32) {
    %c0_i32 = arith.constant 0 : i32
    %c0_i32_0 = arith.constant 0 : i32
    return %arg0, %c0_i32 : i32, i32
  }
  func.func @transform_2(%arg0: i32) -> (i32, i32) {
    %c0_i32 = arith.constant 0 : i32
    %c0_i32_0 = arith.constant 0 : i32
    %c0_i32_1 = arith.constant 0 : i32
    return %c0_i32, %c0_i32_0 : i32, i32
  }
  func.func @transform_3(%arg0: i32) -> (i32, i32) {
    %c0_i32 = arith.constant 0 : i32
    %c0_i32_0 = arith.constant 0 : i32
    %c0_i32_1 = arith.constant 0 : i32
    return %c0_i32, %c0_i32_0 : i32, i32
  }
  func.func @transform_4(%arg0: i32) -> (i32, i32) {
    %c0_i32 = arith.constant 0 : i32
    %c0_i32_0 = arith.constant 0 : i32
    %c0_i32_1 = arith.constant 0 : i32
    return %c0_i32, %c0_i32_0 : i32, i32
  }
  func.func @transform_5(%arg0: i32) -> (i32, i32) {
    %c0_i32 = arith.constant 0 : i32
    %c0_i32_0 = arith.constant 0 : i32
    %c0_i32_1 = arith.constant 0 : i32
    return %c0_i32, %c0_i32_0 : i32, i32
  }
  func.func @transform_6(%arg0: i32) -> (i32, i32) {
    %c0_i32 = arith.constant 0 : i32
    %c0_i32_0 = arith.constant 0 : i32
    return %arg0, %c0_i32 : i32, i32
  }
  func.func @transform_7(%arg0: i32) -> (i32, i32) {
    %c0_i32 = arith.constant 0 : i32
    %c0_i32_0 = arith.constant 0 : i32
    return %arg0, %c0_i32 : i32, i32
  }
}

</mosaic_0001>

<llo_original>
// kernel: tpu_custom_call.1
$region0: #{tpu_custom_call.1}
  #allocation0 [shape = 'u32[]', space=smem, size = 0x4, offset = 0x4, fixed_abs, tag = 'smem constant byte address 0x4 - core index']
  #allocation1 [shape = 'u32[144,128]{1,0:T(1,128)}', space=vmem, size = 0x12000, scoped, tag = 'internal scratch']
  %s0 = inlined_call_operand.vmem [shape: f32[256,16], index: 0, kind: input, shape index: {}]
  %s1 = inlined_call_operand.vmem [shape: f32[256,16], index: 1, kind: input, shape index: {}]
  %s2 = inlined_call_operand.vmem [shape: f32[16,128], index: 2, kind: input, shape index: {}]
  %s3 = inlined_call_operand.vmem [shape: f32[1,128], index: 3, kind: input, shape index: {}]
  %s4 = inlined_call_operand.vmem [shape: bf16[128,128], index: 4, kind: input, shape index: {}]
  %s5 = inlined_call_operand.vmem [shape: f32[1,128], index: 5, kind: input, shape index: {}]
  %s6 = inlined_call_operand.hbm [shape: bf16[256,128], index: 6, kind: output, shape index: {0}]
  %s7 = inlined_call_operand.hbm [shape: f32[256,128], index: 7, kind: output, shape index: {1}]
  %8 = xla_tuple %s6, %s7
  %s9 = sld [smem:[#allocation0]]
  $region42: #{tpu_custom_call.1} parent=0
    _
  %s11 = ssub.s32 1, %s9
  %s12 = scalar_select 0, %s11, %s9
  $region1: #{tpu_custom_call.1} parent=0
    #allocation2 [shape = 'u8[65536]{0}', space=vmem, size = 0x10000, scoped, tag = 'output window, operand 0, single buffered']
    #allocation3 [shape = 's32[1]{0}', space=sflag, size = 0x4, scoped, tag = 'scoped memory for tpu_custom_call.1']
    #allocation4 [shape = 'u8[131072]{0}', space=vmem, size = 0x20000, scoped, tag = 'output window, operand 1, single buffered']
    #allocation5 [shape = 's32[1]{0}', space=sflag, size = 0x4, scoped, tag = 'scoped memory for tpu_custom_call.1']
    %13 = vsyncpa [#allocation3], 0
    %14 = vsyncpa [#allocation5], 0
    // Predicated region
    $region2: #{tpu_custom_call.1} parent=1 // pred_check
      _
    $region3: #{tpu_custom_call.1} parent=1 // pred_check_branch
      %16 = sbr.rel (0) target = $region5
    $region4: #{tpu_custom_call.1} parent=1 // pred_region
      _
    $region5: #{tpu_custom_call.1} parent=1 // pred_fallthru
      _
    // Predicated region
    $region6: #{tpu_custom_call.1} parent=1 // pred_check
      _
    $region7: #{tpu_custom_call.1} parent=1 // pred_check_branch
      %18 = sbr.rel (0) target = $region9
    $region8: #{tpu_custom_call.1} parent=1 // pred_region
      _
    $region9: #{tpu_custom_call.1} parent=1 // pred_fallthru
      _
    // Predicated region
    $region10: #{tpu_custom_call.1} parent=1 // pred_check
      _
    $region11: #{tpu_custom_call.1} parent=1 // pred_check_branch
      %20 = sbr.rel (0) target = $region13
    $region12: #{tpu_custom_call.1} parent=1 // pred_region
      _
    $region13: #{tpu_custom_call.1} parent=1 // pred_fallthru
      _
    // Predicated region
    $region14: #{tpu_custom_call.1} parent=1 // pred_check
      _
    $region15: #{tpu_custom_call.1} parent=1 // pred_check_branch
      %22 = sbr.rel (0) target = $region17
    $region16: #{tpu_custom_call.1} parent=1 // pred_region
      _
    $region17: #{tpu_custom_call.1} parent=1 // pred_fallthru
      _
    // Predicated region
    $region18: #{tpu_custom_call.1} parent=1 // pred_check
      _
    $region19: #{tpu_custom_call.1} parent=1 // pred_check_branch
      %24 = sbr.rel (0) target = $region21
    $region20: #{tpu_custom_call.1} parent=1 // pred_region
      _
    $region21: #{tpu_custom_call.1} parent=1 // pred_fallthru
      _
    // Predicated region
    $region22: #{tpu_custom_call.1} parent=1 // pred_check
      _
    $region23: #{tpu_custom_call.1} parent=1 // pred_check_branch
      %26 = sbr.rel (0) target = $region25
    $region24: #{tpu_custom_call.1} parent=1 // pred_region
      _
    $region25: #{tpu_custom_call.1} parent=1 // pred_fallthru
      _
    %v28 = vld [vmem:[%s0] sm:$0xff]
    %v29 = vld [vmem:[%s0 + $0x8] sm:$0xff]
    %v30 = vld [vmem:[%s0 + $0x10] sm:$0xff]
    %v31 = vld [vmem:[%s0 + $0x18] sm:$0xff]
    %v32 = vld [vmem:[%s0 + $0x20] sm:$0xff]
    %v33 = vld [vmem:[%s0 + $0x28] sm:$0xff]
    %v34 = vld [vmem:[%s0 + $0x30] sm:$0xff]
    %v35 = vld [vmem:[%s0 + $0x38] sm:$0xff]
    %v36 = vld [vmem:[%s0 + $0x40] sm:$0xff]
    %v37 = vld [vmem:[%s0 + $0x48] sm:$0xff]
    %v38 = vld [vmem:[%s0 + $0x50] sm:$0xff]
    %v39 = vld [vmem:[%s0 + $0x58] sm:$0xff]
    %v40 = vld [vmem:[%s0 + $0x60] sm:$0xff]
    %v41 = vld [vmem:[%s0 + $0x68] sm:$0xff]
    %v42 = vld [vmem:[%s0 + $0x70] sm:$0xff]
    %v43 = vld [vmem:[%s0 + $0x78] sm:$0xff]
    %v44 = vld [vmem:[%s0 + $0x80] sm:$0xff]
    %v45 = vld [vmem:[%s0 + $0x88] sm:$0xff]
    %v46 = vld [vmem:[%s0 + $0x90] sm:$0xff]
    %v47 = vld [vmem:[%s0 + $0x98] sm:$0xff]
    %v48 = vld [vmem:[%s0 + $0xa0] sm:$0xff]
    %v49 = vld [vmem:[%s0 + $0xa8] sm:$0xff]
    %v50 = vld [vmem:[%s0 + $0xb0] sm:$0xff]
    %v51 = vld [vmem:[%s0 + $0xb8] sm:$0xff]
    %v52 = vld [vmem:[%s0 + $0xc0] sm:$0xff]
    %v53 = vld [vmem:[%s0 + $0xc8] sm:$0xff]
    %v54 = vld [vmem:[%s0 + $0xd0] sm:$0xff]
    %v55 = vld [vmem:[%s0 + $0xd8] sm:$0xff]
    %v56 = vld [vmem:[%s0 + $0xe0] sm:$0xff]
    %v57 = vld [vmem:[%s0 + $0xe8] sm:$0xff]
    %v58 = vld [vmem:[%s0 + $0xf0] sm:$0xff]
    %v59 = vld [vmem:[%s0 + $0xf8] sm:$0xff]
    %v60 = vld [vmem:[%s1] sm:$0xff]
    %v61 = vld [vmem:[%s1 + $0x8] sm:$0xff]
    %v62 = vld [vmem:[%s1 + $0x10] sm:$0xff]
    %v63 = vld [vmem:[%s1 + $0x18] sm:$0xff]
    %v64 = vld [vmem:[%s1 + $0x20] sm:$0xff]
    %v65 = vld [vmem:[%s1 + $0x28] sm:$0xff]
    %v66 = vld [vmem:[%s1 + $0x30] sm:$0xff]
    %v67 = vld [vmem:[%s1 + $0x38] sm:$0xff]
    %v68 = vld [vmem:[%s1 + $0x40] sm:$0xff]
    %v69 = vld [vmem:[%s1 + $0x48] sm:$0xff]
    %v70 = vld [vmem:[%s1 + $0x50] sm:$0xff]
    %v71 = vld [vmem:[%s1 + $0x58] sm:$0xff]
    %v72 = vld [vmem:[%s1 + $0x60] sm:$0xff]
    %v73 = vld [vmem:[%s1 + $0x68] sm:$0xff]
    %v74 = vld [vmem:[%s1 + $0x70] sm:$0xff]
    %v75 = vld [vmem:[%s1 + $0x78] sm:$0xff]
    %v76 = vld [vmem:[%s1 + $0x80] sm:$0xff]
    %v77 = vld [vmem:[%s1 + $0x88] sm:$0xff]
    %v78 = vld [vmem:[%s1 + $0x90] sm:$0xff]
    %v79 = vld [vmem:[%s1 + $0x98] sm:$0xff]
    %v80 = vld [vmem:[%s1 + $0xa0] sm:$0xff]
    %v81 = vld [vmem:[%s1 + $0xa8] sm:$0xff]
    %v82 = vld [vmem:[%s1 + $0xb0] sm:$0xff]
    %v83 = vld [vmem:[%s1 + $0xb8] sm:$0xff]
    %v84 = vld [vmem:[%s1 + $0xc0] sm:$0xff]
    %v85 = vld [vmem:[%s1 + $0xc8] sm:$0xff]
    %v86 = vld [vmem:[%s1 + $0xd0] sm:$0xff]
    %v87 = vld [vmem:[%s1 + $0xd8] sm:$0xff]
    %v88 = vld [vmem:[%s1 + $0xe0] sm:$0xff]
    %v89 = vld [vmem:[%s1 + $0xe8] sm:$0xff]
    %v90 = vld [vmem:[%s1 + $0xf0] sm:$0xff]
    %v91 = vld [vmem:[%s1 + $0xf8] sm:$0xff]
    %v92 = vsub.f32 %v60, %v28
    %v93 = vsub.f32 %v61, %v29
    %v94 = vsub.f32 %v62, %v30
    %v95 = vsub.f32 %v63, %v31
    %v96 = vsub.f32 %v64, %v32
    %v97 = vsub.f32 %v65, %v33
    %v98 = vsub.f32 %v66, %v34
    %v99 = vsub.f32 %v67, %v35
    %v100 = vsub.f32 %v68, %v36
    %v101 = vsub.f32 %v69, %v37
    %v102 = vsub.f32 %v70, %v38
    %v103 = vsub.f32 %v71, %v39
    %v104 = vsub.f32 %v72, %v40
    %v105 = vsub.f32 %v73, %v41
    %v106 = vsub.f32 %v74, %v42
    %v107 = vsub.f32 %v75, %v43
    %v108 = vsub.f32 %v76, %v44
    %v109 = vsub.f32 %v77, %v45
    %v110 = vsub.f32 %v78, %v46
    %v111 = vsub.f32 %v79, %v47
    %v112 = vsub.f32 %v80, %v48
    %v113 = vsub.f32 %v81, %v49
    %v114 = vsub.f32 %v82, %v50
    %v115 = vsub.f32 %v83, %v51
    %v116 = vsub.f32 %v84, %v52
    %v117 = vsub.f32 %v85, %v53
    %v118 = vsub.f32 %v86, %v54
    %v119 = vsub.f32 %v87, %v55
    %v120 = vsub.f32 %v88, %v56
    %v121 = vsub.f32 %v89, %v57
    %v122 = vsub.f32 %v90, %v58
    %v123 = vsub.f32 %v91, %v59
    %v124 = vld [vmem:[%s2] sm:$0xff]
    %v125 = vld [vmem:[%s2 + $0x8] sm:$0xff]
    %v126 = vld [vmem:[%s3] sm:$0x1]
    %v128 = vlaneseq
    %v129 = vshrl.u32 %v128, 7
    %v130 = vsub.s32 0, %v129
    %v131 = vrot.slane %v126, %v130
    %vm133 = vcmask 130048
    %v135 = vsel %vm133, %v28, 0
    %v138 = vsel %vm133, %v29, 0
    %v141 = vsel %vm133, %v30, 0
    %v144 = vsel %vm133, %v31, 0
    %v147 = vsel %vm133, %v32, 0
    %v150 = vsel %vm133, %v33, 0
    %v153 = vsel %vm133, %v34, 0
    %v156 = vsel %vm133, %v35, 0
    %v159 = vsel %vm133, %v36, 0
    %v162 = vsel %vm133, %v37, 0
    %v165 = vsel %vm133, %v38, 0
    %v168 = vsel %vm133, %v39, 0
    %v171 = vsel %vm133, %v40, 0
    %v174 = vsel %vm133, %v41, 0
    %v177 = vsel %vm133, %v42, 0
    %v180 = vsel %vm133, %v43, 0
    %v183 = vsel %vm133, %v44, 0
    %v186 = vsel %vm133, %v45, 0
    %v189 = vsel %vm133, %v46, 0
    %v192 = vsel %vm133, %v47, 0
    %v195 = vsel %vm133, %v48, 0
    %v198 = vsel %vm133, %v49, 0
    %v201 = vsel %vm133, %v50, 0
    %v204 = vsel %vm133, %v51, 0
    %v207 = vsel %vm133, %v52, 0
    %v210 = vsel %vm133, %v53, 0
    %v213 = vsel %vm133, %v54, 0
    %v216 = vsel %vm133, %v55, 0
    %v219 = vsel %vm133, %v56, 0
    %v222 = vsel %vm133, %v57, 0
    %v225 = vsel %vm133, %v58, 0
    %v228 = vsel %vm133, %v59, 0
    %v231 = vsel %vm133, %v92, 0
    %v234 = vsel %vm133, %v93, 0
    %v237 = vsel %vm133, %v94, 0
    %v240 = vsel %vm133, %v95, 0
    %v243 = vsel %vm133, %v96, 0
    %v246 = vsel %vm133, %v97, 0
    %v249 = vsel %vm133, %v98, 0
    %v252 = vsel %vm133, %v99, 0
    %v255 = vsel %vm133, %v100, 0
    %v258 = vsel %vm133, %v101, 0
    %v261 = vsel %vm133, %v102, 0
    %v264 = vsel %vm133, %v103, 0
    %v267 = vsel %vm133, %v104, 0
    %v270 = vsel %vm133, %v105, 0
    %v273 = vsel %vm133, %v106, 0
    %v276 = vsel %vm133, %v107, 0
    %v279 = vsel %vm133, %v108, 0
    %v282 = vsel %vm133, %v109, 0
    %v285 = vsel %vm133, %v110, 0
    %v288 = vsel %vm133, %v111, 0
    %v291 = vsel %vm133, %v112, 0
    %v294 = vsel %vm133, %v113, 0
    %v297 = vsel %vm133, %v114, 0
    %v300 = vsel %vm133, %v115, 0
    %v303 = vsel %vm133, %v116, 0
    %v306 = vsel %vm133, %v117, 0
    %v309 = vsel %vm133, %v118, 0
    %v312 = vsel %vm133, %v119, 0
    %v315 = vsel %vm133, %v120, 0
    %v318 = vsel %vm133, %v121, 0
    %v321 = vsel %vm133, %v122, 0
    %v324 = vsel %vm133, %v123, 0
    %326 = vmatprep.subr.mxu0 0.0
    %327 = vmatpush1.msra.mxu0 %v124
    %328 = vmatprep.subr.mxu0 0.0
    %329 = vmatpush1.msra.mxu0 %v125
    %330 = vmatprep.subr.mxu0 0.0
    %331 = vmatpush1.msra.mxu0 0.0
    %332 = vmatprep.subr.mxu0 0.0
    %333 = vmatpush1.msra.mxu0 0.0
    %334 = vmatprep.subr.mxu0 0.0
    %335 = vmatpush1.msra.mxu0 0.0
    %336 = vmatprep.subr.mxu0 0.0
    %337 = vmatpush1.msra.mxu0 0.0
    %338 = vmatprep.subr.mxu0 0.0
    %339 = vmatpush1.msra.mxu0 0.0
    %340 = vmatprep.subr.mxu0 0.0
    %341 = vmatpush1.msra.mxu0 0.0
    %342 = vmatprep.subr.mxu0 0.0
    %343 = vmatpush1.msra.mxu0 0.0
    %344 = vmatprep.subr.mxu0 0.0
    %345 = vmatpush1.msra.mxu0 0.0
    %346 = vmatprep.subr.mxu0 0.0
    %347 = vmatpush1.msra.mxu0 0.0
    %348 = vmatprep.subr.mxu0 0.0
    %349 = vmatpush1.msra.mxu0 0.0
    %350 = vmatprep.subr.mxu0 0.0
    %351 = vmatpush1.msra.mxu0 0.0
    %352 = vmatprep.subr.mxu0 0.0
    %353 = vmatpush1.msra.mxu0 0.0
    %354 = vmatprep.subr.mxu0 0.0
    %355 = vmatpush1.msra.mxu0 0.0
    %356 = vmatprep.subr.mxu0 0.0
    %357 = vmatpush1.msra.mxu0 0.0
    %358 = vmatprep.subr.mxu0 0.0
    %359 = vmatpush1.msra.mxu0 0.0
    %360 = vmatprep.subr.mxu0 0.0
    %361 = vmatpush1.msra.mxu0 0.0
    %362 = vmatprep.subr.mxu0 0.0
    %363 = vmatpush1.msra.mxu0 0.0
    %364 = vmatprep.subr.mxu0 0.0
    %365 = vmatpush1.msra.mxu0 0.0
    %366 = vmatprep.subr.mxu0 0.0
    %367 = vmatpush1.msra.mxu0 0.0
    %368 = vmatprep.subr.mxu0 0.0
    %369 = vmatpush1.msra.mxu0 0.0
    %370 = vmatprep.subr.mxu0 0.0
    %371 = vmatpush1.msra.mxu0 0.0
    %372 = vmatprep.subr.mxu0 0.0
    %373 = vmatpush1.msra.mxu0 0.0
    %374 = vmatprep.subr.mxu0 0.0
    %375 = vmatpush1.msra.mxu0 0.0
    %376 = vmatprep.subr.mxu0 0.0
    %377 = vmatpush1.msra.mxu0 0.0
    %378 = vmatprep.subr.mxu0 0.0
    %379 = vmatpush1.msra.mxu0 0.0
    %380 = vmatprep.subr.mxu0 0.0
    %381 = vmatpush1.msra.mxu0 0.0
    %382 = vmatprep.subr.mxu0 0.0
    %383 = vmatpush1.msra.mxu0 0.0
    %384 = vmatprep.subr.mxu0 0.0
    %385 = vmatpush1.msra.mxu0 0.0
    %386 = vmatprep.subr.mxu0 0.0
    %387 = vmatpush1.msra.mxu0 0.0
    %388 = vmatprep.subr.mxu0 0.0
    %389 = vmatpush1.msra.mxu0 0.0
    %390 = vmatprep.mubr.f32.mxu0 0.0
    %391 = vmatmul.mubr.f32.gmra.mrb[0].mxu0 %v135
    %v392 = vpop.f32.mrb[0].mxu0
    %v393 = vadd.f32 %v131, %v392
    %v394 = vpop.f32.mrb[0].mxu0
    %395 = vmatprep.mubr.f32.mxu0 0.0
    %396 = vmatmul.mubr.f32.gmra.mrb[0].mxu0 %v138
    %v397 = vpop.f32.mrb[0].mxu0
    %v398 = vadd.f32 %v131, %v397
    %v399 = vpop.f32.mrb[0].mxu0
    %400 = vmatprep.mubr.f32.mxu0 0.0
    %401 = vmatmul.mubr.f32.gmra.mrb[0].mxu0 %v141
    %v402 = vpop.f32.mrb[0].mxu0
    %v403 = vadd.f32 %v131, %v402
    %v404 = vpop.f32.mrb[0].mxu0
    %405 = vmatprep.mubr.f32.mxu0 0.0
    %406 = vmatmul.mubr.f32.gmra.mrb[0].mxu0 %v144
    %v407 = vpop.f32.mrb[0].mxu0
    %v408 = vadd.f32 %v131, %v407
    %v409 = vpop.f32.mrb[0].mxu0
    %410 = vmatprep.mubr.f32.mxu0 0.0
    %411 = vmatmul.mubr.f32.gmra.mrb[0].mxu0 %v147
    %v412 = vpop.f32.mrb[0].mxu0
    %v413 = vadd.f32 %v131, %v412
    %v414 = vpop.f32.mrb[0].mxu0
    %415 = vmatprep.mubr.f32.mxu0 0.0
    %416 = vmatmul.mubr.f32.gmra.mrb[0].mxu0 %v150
    %v417 = vpop.f32.mrb[0].mxu0
    %v418 = vadd.f32 %v131, %v417
    %v419 = vpop.f32.mrb[0].mxu0
    %420 = vmatprep.mubr.f32.mxu0 0.0
    %421 = vmatmul.mubr.f32.gmra.mrb[0].mxu0 %v153
    %v422 = vpop.f32.mrb[0].mxu0
    %v423 = vadd.f32 %v131, %v422
    %v424 = vpop.f32.mrb[0].mxu0
    %425 = vmatprep.mubr.f32.mxu0 0.0
    %426 = vmatmul.mubr.f32.gmra.mrb[0].mxu0 %v156
    %v427 = vpop.f32.mrb[0].mxu0
    %v428 = vadd.f32 %v131, %v427
    %v429 = vpop.f32.mrb[0].mxu0
    %430 = vmatprep.mubr.f32.mxu0 0.0
    %431 = vmatmul.mubr.f32.gmra.mrb[0].mxu0 %v159
    %v432 = vpop.f32.mrb[0].mxu0
    %v433 = vadd.f32 %v131, %v432
    %v434 = vpop.f32.mrb[0].mxu0
    %435 = vmatprep.mubr.f32.mxu0 0.0
    %436 = vmatmul.mubr.f32.gmra.mrb[0].mxu0 %v162
    %v437 = vpop.f32.mrb[0].mxu0
    %v438 = vadd.f32 %v131, %v437
    %v439 = vpop.f32.mrb[0].mxu0
    %440 = vmatprep.mubr.f32.mxu0 0.0
    %441 = vmatmul.mubr.f32.gmra.mrb[0].mxu0 %v165
    %v442 = vpop.f32.mrb[0].mxu0
    %v443 = vadd.f32 %v131, %v442
    %v444 = vpop.f32.mrb[0].mxu0
    %445 = vmatprep.mubr.f32.mxu0 0.0
    %446 = vmatmul.mubr.f32.gmra.mrb[0].mxu0 %v168
    %v447 = vpop.f32.mrb[0].mxu0
    %v448 = vadd.f32 %v131, %v447
    %v449 = vpop.f32.mrb[0].mxu0
    %450 = vmatprep.mubr.f32.mxu0 0.0
    %451 = vmatmul.mubr.f32.gmra.mrb[0].mxu0 %v171
    %v452 = vpop.f32.mrb[0].mxu0
    %v453 = vadd.f32 %v131, %v452
    %v454 = vpop.f32.mrb[0].mxu0
    %455 = vmatprep.mubr.f32.mxu0 0.0
    %456 = vmatmul.mubr.f32.gmra.mrb[0].mxu0 %v174
    %v457 = vpop.f32.mrb[0].mxu0
    %v458 = vadd.f32 %v131, %v457
    %v459 = vpop.f32.mrb[0].mxu0
    %460 = vmatprep.mubr.f32.mxu0 0.0
    %461 = vmatmul.mubr.f32.gmra.mrb[0].mxu0 %v177
    %v462 = vpop.f32.mrb[0].mxu0
    %v463 = vadd.f32 %v131, %v462
    %v464 = vpop.f32.mrb[0].mxu0
    %465 = vmatprep.mubr.f32.mxu0 0.0
    %466 = vmatmul.mubr.f32.gmra.mrb[0].mxu0 %v180
    %v467 = vpop.f32.mrb[0].mxu0
    %v468 = vadd.f32 %v131, %v467
    %v469 = vpop.f32.mrb[0].mxu0
    %470 = vmatprep.mubr.f32.mxu0 0.0
    %471 = vmatmul.mubr.f32.gmra.mrb[0].mxu0 %v183
    %v472 = vpop.f32.mrb[0].mxu0
    %v473 = vadd.f32 %v131, %v472
    %v474 = vpop.f32.mrb[0].mxu0
    %475 = vmatprep.mubr.f32.mxu0 0.0
    %476 = vmatmul.mubr.f32.gmra.mrb[0].mxu0 %v186
    %v477 = vpop.f32.mrb[0].mxu0
    %v478 = vadd.f32 %v131, %v477
    %v479 = vpop.f32.mrb[0].mxu0
    %480 = vmatprep.mubr.f32.mxu0 0.0
    %481 = vmatmul.mubr.f32.gmra.mrb[0].mxu0 %v189
    %v482 = vpop.f32.mrb[0].mxu0
    %v483 = vadd.f32 %v131, %v482
    %v484 = vpop.f32.mrb[0].mxu0
    %485 = vmatprep.mubr.f32.mxu0 0.0
    %486 = vmatmul.mubr.f32.gmra.mrb[0].mxu0 %v192
    %v487 = vpop.f32.mrb[0].mxu0
    %v488 = vadd.f32 %v131, %v487
    %v489 = vpop.f32.mrb[0].mxu0
    %490 = vmatprep.mubr.f32.mxu0 0.0
    %491 = vmatmul.mubr.f32.gmra.mrb[0].mxu0 %v195
    %v492 = vpop.f32.mrb[0].mxu0
    %v493 = vadd.f32 %v131, %v492
    %v494 = vpop.f32.mrb[0].mxu0
    %495 = vmatprep.mubr.f32.mxu0 0.0
    %496 = vmatmul.mubr.f32.gmra.mrb[0].mxu0 %v198
    %v497 = vpop.f32.mrb[0].mxu0
    %v498 = vadd.f32 %v131, %v497
    %v499 = vpop.f32.mrb[0].mxu0
    %500 = vmatprep.mubr.f32.mxu0 0.0
    %501 = vmatmul.mubr.f32.gmra.mrb[0].mxu0 %v201
    %v502 = vpop.f32.mrb[0].mxu0
    %v503 = vadd.f32 %v131, %v502
    %v504 = vpop.f32.mrb[0].mxu0
    %505 = vmatprep.mubr.f32.mxu0 0.0
    %506 = vmatmul.mubr.f32.gmra.mrb[0].mxu0 %v204
    %v507 = vpop.f32.mrb[0].mxu0
    %v508 = vadd.f32 %v131, %v507
    %v509 = vpop.f32.mrb[0].mxu0
    %510 = vmatprep.mubr.f32.mxu0 0.0
    %511 = vmatmul.mubr.f32.gmra.mrb[0].mxu0 %v207
    %v512 = vpop.f32.mrb[0].mxu0
    %v513 = vadd.f32 %v131, %v512
    %v514 = vpop.f32.mrb[0].mxu0
    %515 = vmatprep.mubr.f32.mxu0 0.0
    %516 = vmatmul.mubr.f32.gmra.mrb[0].mxu0 %v210
    %v517 = vpop.f32.mrb[0].mxu0
    %v518 = vadd.f32 %v131, %v517
    %v519 = vpop.f32.mrb[0].mxu0
    %520 = vmatprep.mubr.f32.mxu0 0.0
    %521 = vmatmul.mubr.f32.gmra.mrb[0].mxu0 %v213
    %v522 = vpop.f32.mrb[0].mxu0
    %v523 = vadd.f32 %v131, %v522
    %v524 = vpop.f32.mrb[0].mxu0
    %525 = vmatprep.mubr.f32.mxu0 0.0
    %526 = vmatmul.mubr.f32.gmra.mrb[0].mxu0 %v216
    %v527 = vpop.f32.mrb[0].mxu0
    %v528 = vadd.f32 %v131, %v527
    %v529 = vpop.f32.mrb[0].mxu0
    %530 = vmatprep.mubr.f32.mxu0 0.0
    %531 = vmatmul.mubr.f32.gmra.mrb[0].mxu0 %v219
    %v532 = vpop.f32.mrb[0].mxu0
    %v533 = vadd.f32 %v131, %v532
    %v534 = vpop.f32.mrb[0].mxu0
    %535 = vmatprep.mubr.f32.mxu0 0.0
    %536 = vmatmul.mubr.f32.gmra.mrb[0].mxu0 %v222
    %v537 = vpop.f32.mrb[0].mxu0
    %v538 = vadd.f32 %v131, %v537
    %v539 = vpop.f32.mrb[0].mxu0
    %540 = vmatprep.mubr.f32.mxu0 0.0
    %541 = vmatmul.mubr.f32.gmra.mrb[0].mxu0 %v225
    %v542 = vpop.f32.mrb[0].mxu0
    %v543 = vadd.f32 %v131, %v542
    %v544 = vpop.f32.mrb[0].mxu0
    %545 = vmatprep.mubr.f32.mxu0 0.0
    %546 = vmatmul.mubr.f32.gmra.mrb[0].mxu0 %v228
    %v547 = vpop.f32.mrb[0].mxu0
    %v548 = vadd.f32 %v131, %v547
    %v549 = vpop.f32.mrb[0].mxu0
    %550 = vmatprep.mubr.f32.mxu0 0.0
    %551 = vmatmul.mubr.f32.gmra.mrb[0].mxu0 %v231
    %v552 = vpop.f32.mrb[0].mxu0
    %v553 = vadd.f32 %v131, %v552
    %v554 = vpop.f32.mrb[0].mxu0
    %555 = vmatprep.mubr.f32.mxu0 0.0
    %556 = vmatmul.mubr.f32.gmra.mrb[0].mxu0 %v234
    %v557 = vpop.f32.mrb[0].mxu0
    %v558 = vadd.f32 %v131, %v557
    %v559 = vpop.f32.mrb[0].mxu0
    %560 = vmatprep.mubr.f32.mxu0 0.0
    %561 = vmatmul.mubr.f32.gmra.mrb[0].mxu0 %v237
    %v562 = vpop.f32.mrb[0].mxu0
    %v563 = vadd.f32 %v131, %v562
    %v564 = vpop.f32.mrb[0].mxu0
    %565 = vmatprep.mubr.f32.mxu0 0.0
    %566 = vmatmul.mubr.f32.gmra.mrb[0].mxu0 %v240
    %v567 = vpop.f32.mrb[0].mxu0
    %v568 = vadd.f32 %v131, %v567
    %v569 = vpop.f32.mrb[0].mxu0
    %570 = vmatprep.mubr.f32.mxu0 0.0
    %571 = vmatmul.mubr.f32.gmra.mrb[0].mxu0 %v243
    %v572 = vpop.f32.mrb[0].mxu0
    %v573 = vadd.f32 %v131, %v572
    %v574 = vpop.f32.mrb[0].mxu0
    %575 = vmatprep.mubr.f32.mxu0 0.0
    %576 = vmatmul.mubr.f32.gmra.mrb[0].mxu0 %v246
    %v577 = vpop.f32.mrb[0].mxu0
    %v578 = vadd.f32 %v131, %v577
    %v579 = vpop.f32.mrb[0].mxu0
    %580 = vmatprep.mubr.f32.mxu0 0.0
    %581 = vmatmul.mubr.f32.gmra.mrb[0].mxu0 %v249
    %v582 = vpop.f32.mrb[0].mxu0
    %v583 = vadd.f32 %v131, %v582
    %v584 = vpop.f32.mrb[0].mxu0
    %585 = vmatprep.mubr.f32.mxu0 0.0
    %586 = vmatmul.mubr.f32.gmra.mrb[0].mxu0 %v252
    %v587 = vpop.f32.mrb[0].mxu0
    %v588 = vadd.f32 %v131, %v587
    %v589 = vpop.f32.mrb[0].mxu0
    %590 = vmatprep.mubr.f32.mxu0 0.0
    %591 = vmatmul.mubr.f32.gmra.mrb[0].mxu0 %v255
    %v592 = vpop.f32.mrb[0].mxu0
    %v593 = vadd.f32 %v131, %v592
    %v594 = vpop.f32.mrb[0].mxu0
    %595 = vmatprep.mubr.f32.mxu0 0.0
    %596 = vmatmul.mubr.f32.gmra.mrb[0].mxu0 %v258
    %v597 = vpop.f32.mrb[0].mxu0
    %v598 = vadd.f32 %v131, %v597
    %v599 = vpop.f32.mrb[0].mxu0
    %600 = vmatprep.mubr.f32.mxu0 0.0
    %601 = vmatmul.mubr.f32.gmra.mrb[0].mxu0 %v261
    %v602 = vpop.f32.mrb[0].mxu0
    %v603 = vadd.f32 %v131, %v602
    %v604 = vpop.f32.mrb[0].mxu0
    %605 = vmatprep.mubr.f32.mxu0 0.0
    %606 = vmatmul.mubr.f32.gmra.mrb[0].mxu0 %v264
    %v607 = vpop.f32.mrb[0].mxu0
    %v608 = vadd.f32 %v131, %v607
    %v609 = vpop.f32.mrb[0].mxu0
    %610 = vmatprep.mubr.f32.mxu0 0.0
    %611 = vmatmul.mubr.f32.gmra.mrb[0].mxu0 %v267
    %v612 = vpop.f32.mrb[0].mxu0
    %v613 = vadd.f32 %v131, %v612
    %v614 = vpop.f32.mrb[0].mxu0
    %615 = vmatprep.mubr.f32.mxu0 0.0
    %616 = vmatmul.mubr.f32.gmra.mrb[0].mxu0 %v270
    %v617 = vpop.f32.mrb[0].mxu0
    %v618 = vadd.f32 %v131, %v617
    %v619 = vpop.f32.mrb[0].mxu0
    %620 = vmatprep.mubr.f32.mxu0 0.0
    %621 = vmatmul.mubr.f32.gmra.mrb[0].mxu0 %v273
    %v622 = vpop.f32.mrb[0].mxu0
    %v623 = vadd.f32 %v131, %v622
    %v624 = vpop.f32.mrb[0].mxu0
    %625 = vmatprep.mubr.f32.mxu0 0.0
    %626 = vmatmul.mubr.f32.gmra.mrb[0].mxu0 %v276
    %v627 = vpop.f32.mrb[0].mxu0
    %v628 = vadd.f32 %v131, %v627
    %v629 = vpop.f32.mrb[0].mxu0
    %630 = vmatprep.mubr.f32.mxu0 0.0
    %631 = vmatmul.mubr.f32.gmra.mrb[0].mxu0 %v279
    %v632 = vpop.f32.mrb[0].mxu0
    %v633 = vadd.f32 %v131, %v632
    %v634 = vpop.f32.mrb[0].mxu0
    %635 = vmatprep.mubr.f32.mxu0 0.0
    %636 = vmatmul.mubr.f32.gmra.mrb[0].mxu0 %v282
    %v637 = vpop.f32.mrb[0].mxu0
    %v638 = vadd.f32 %v131, %v637
    %v639 = vpop.f32.mrb[0].mxu0
    %640 = vmatprep.mubr.f32.mxu0 0.0
    %641 = vmatmul.mubr.f32.gmra.mrb[0].mxu0 %v285
    %v642 = vpop.f32.mrb[0].mxu0
    %v643 = vadd.f32 %v131, %v642
    %v644 = vpop.f32.mrb[0].mxu0
    %645 = vmatprep.mubr.f32.mxu0 0.0
    %646 = vmatmul.mubr.f32.gmra.mrb[0].mxu0 %v288
    %v647 = vpop.f32.mrb[0].mxu0
    %v648 = vadd.f32 %v131, %v647
    %v649 = vpop.f32.mrb[0].mxu0
    %650 = vmatprep.mubr.f32.mxu0 0.0
    %651 = vmatmul.mubr.f32.gmra.mrb[0].mxu0 %v291
    %v652 = vpop.f32.mrb[0].mxu0
    %v653 = vadd.f32 %v131, %v652
    %v654 = vpop.f32.mrb[0].mxu0
    %655 = vmatprep.mubr.f32.mxu0 0.0
    %656 = vmatmul.mubr.f32.gmra.mrb[0].mxu0 %v294
    %v657 = vpop.f32.mrb[0].mxu0
    %v658 = vadd.f32 %v131, %v657
    %v659 = vpop.f32.mrb[0].mxu0
    %660 = vmatprep.mubr.f32.mxu0 0.0
    %661 = vmatmul.mubr.f32.gmra.mrb[0].mxu0 %v297
    %v662 = vpop.f32.mrb[0].mxu0
    %v663 = vadd.f32 %v131, %v662
    %v664 = vpop.f32.mrb[0].mxu0
    %665 = vmatprep.mubr.f32.mxu0 0.0
    %666 = vmatmul.mubr.f32.gmra.mrb[0].mxu0 %v300
    %v667 = vpop.f32.mrb[0].mxu0
    %v668 = vadd.f32 %v131, %v667
    %v669 = vpop.f32.mrb[0].mxu0
    %670 = vmatprep.mubr.f32.mxu0 0.0
    %671 = vmatmul.mubr.f32.gmra.mrb[0].mxu0 %v303
    %v672 = vpop.f32.mrb[0].mxu0
    %v673 = vadd.f32 %v131, %v672
    %v674 = vpop.f32.mrb[0].mxu0
    %675 = vmatprep.mubr.f32.mxu0 0.0
    %676 = vmatmul.mubr.f32.gmra.mrb[0].mxu0 %v306
    %v677 = vpop.f32.mrb[0].mxu0
    %v678 = vadd.f32 %v131, %v677
    %v679 = vpop.f32.mrb[0].mxu0
    %680 = vmatprep.mubr.f32.mxu0 0.0
    %681 = vmatmul.mubr.f32.gmra.mrb[0].mxu0 %v309
    %v682 = vpop.f32.mrb[0].mxu0
    %v683 = vadd.f32 %v131, %v682
    %v684 = vpop.f32.mrb[0].mxu0
    %685 = vmatprep.mubr.f32.mxu0 0.0
    %686 = vmatmul.mubr.f32.gmra.mrb[0].mxu0 %v312
    %v687 = vpop.f32.mrb[0].mxu0
    %v688 = vadd.f32 %v131, %v687
    %v689 = vpop.f32.mrb[0].mxu0
    %690 = vmatprep.mubr.f32.mxu0 0.0
    %691 = vmatmul.mubr.f32.gmra.mrb[0].mxu0 %v315
    %v692 = vpop.f32.mrb[0].mxu0
    %v693 = vadd.f32 %v131, %v692
    %v694 = vpop.f32.mrb[0].mxu0
    %695 = vmatprep.mubr.f32.mxu0 0.0
    %696 = vmatmul.mubr.f32.gmra.mrb[0].mxu0 %v318
    %v697 = vpop.f32.mrb[0].mxu0
    %v698 = vadd.f32 %v131, %v697
    %v699 = vpop.f32.mrb[0].mxu0
    %700 = vmatprep.mubr.f32.mxu0 0.0
    %701 = vmatmul.mubr.f32.gmra.mrb[0].mxu0 %v321
    %v702 = vpop.f32.mrb[0].mxu0
    %v703 = vadd.f32 %v131, %v702
    %v704 = vpop.f32.mrb[0].mxu0
    %705 = vmatprep.mubr.f32.mxu0 0.0
    %706 = vmatmul.mubr.f32.gmra.mrb[0].mxu0 %v324
    %v707 = vpop.f32.mrb[0].mxu0
    %v708 = vadd.f32 %v131, %v707
    %v709 = vpop.f32.mrb[0].mxu0
    %710 = vdwg.mxu0
    %vm711 = vcmp.ge.f32.partialorder %v393, 0.0
    %vm712 = vcmp.ge.f32.partialorder %v398, 0.0
    %vm713 = vcmp.ge.f32.partialorder %v403, 0.0
    %vm714 = vcmp.ge.f32.partialorder %v408, 0.0
    %vm715 = vcmp.ge.f32.partialorder %v413, 0.0
    %vm716 = vcmp.ge.f32.partialorder %v418, 0.0
    %vm717 = vcmp.ge.f32.partialorder %v423, 0.0
    %vm718 = vcmp.ge.f32.partialorder %v428, 0.0
    %vm719 = vcmp.ge.f32.partialorder %v433, 0.0
    %vm720 = vcmp.ge.f32.partialorder %v438, 0.0
    %vm721 = vcmp.ge.f32.partialorder %v443, 0.0
    %vm722 = vcmp.ge.f32.partialorder %v448, 0.0
    %vm723 = vcmp.ge.f32.partialorder %v453, 0.0
    %vm724 = vcmp.ge.f32.partialorder %v458, 0.0
    %vm725 = vcmp.ge.f32.partialorder %v463, 0.0
    %vm726 = vcmp.ge.f32.partialorder %v468, 0.0
    %vm727 = vcmp.ge.f32.partialorder %v473, 0.0
    %vm728 = vcmp.ge.f32.partialorder %v478, 0.0
    %vm729 = vcmp.ge.f32.partialorder %v483, 0.0
    %vm730 = vcmp.ge.f32.partialorder %v488, 0.0
    %vm731 = vcmp.ge.f32.partialorder %v493, 0.0
    %vm732 = vcmp.ge.f32.partialorder %v498, 0.0
    %vm733 = vcmp.ge.f32.partialorder %v503, 0.0
    %vm734 = vcmp.ge.f32.partialorder %v508, 0.0
    %vm735 = vcmp.ge.f32.partialorder %v513, 0.0
    %vm736 = vcmp.ge.f32.partialorder %v518, 0.0
    %vm737 = vcmp.ge.f32.partialorder %v523, 0.0
    %vm738 = vcmp.ge.f32.partialorder %v528, 0.0
    %vm739 = vcmp.ge.f32.partialorder %v533, 0.0
    %vm740 = vcmp.ge.f32.partialorder %v538, 0.0
    %vm741 = vcmp.ge.f32.partialorder %v543, 0.0
    %vm742 = vcmp.ge.f32.partialorder %v548, 0.0
    %vm743 = vcmp.ge.f32.partialorder %v553, 0.0
    %vm744 = vcmp.ge.f32.partialorder %v558, 0.0
    %vm745 = vcmp.ge.f32.partialorder %v563, 0.0
    %vm746 = vcmp.ge.f32.partialorder %v568, 0.0
    %vm747 = vcmp.ge.f32.partialorder %v573, 0.0
    %vm748 = vcmp.ge.f32.partialorder %v578, 0.0
    %vm749 = vcmp.ge.f32.partialorder %v583, 0.0
    %vm750 = vcmp.ge.f32.partialorder %v588, 0.0
    %vm751 = vcmp.ge.f32.partialorder %v593, 0.0
    %vm752 = vcmp.ge.f32.partialorder %v598, 0.0
    %vm753 = vcmp.ge.f32.partialorder %v603, 0.0
    %vm754 = vcmp.ge.f32.partialorder %v608, 0.0
    %vm755 = vcmp.ge.f32.partialorder %v613, 0.0
    %vm756 = vcmp.ge.f32.partialorder %v618, 0.0
    %vm757 = vcmp.ge.f32.partialorder %v623, 0.0
    %vm758 = vcmp.ge.f32.partialorder %v628, 0.0
    %vm759 = vcmp.ge.f32.partialorder %v633, 0.0
    %vm760 = vcmp.ge.f32.partialorder %v638, 0.0
    %vm761 = vcmp.ge.f32.partialorder %v643, 0.0
    %vm762 = vcmp.ge.f32.partialorder %v648, 0.0
    %vm763 = vcmp.ge.f32.partialorder %v653, 0.0
    %vm764 = vcmp.ge.f32.partialorder %v658, 0.0
    %vm765 = vcmp.ge.f32.partialorder %v663, 0.0
    %vm766 = vcmp.ge.f32.partialorder %v668, 0.0
    %vm767 = vcmp.ge.f32.partialorder %v673, 0.0
    %vm768 = vcmp.ge.f32.partialorder %v678, 0.0
    %vm769 = vcmp.ge.f32.partialorder %v683, 0.0
    %vm770 = vcmp.ge.f32.partialorder %v688, 0.0
    %vm771 = vcmp.ge.f32.partialorder %v693, 0.0
    %vm772 = vcmp.ge.f32.partialorder %v698, 0.0
    %vm773 = vcmp.ge.f32.partialorder %v703, 0.0
    %vm774 = vcmp.ge.f32.partialorder %v708, 0.0
    %v775 = vmul.f32 %v393, 0.01
    %v776 = vmul.f32 %v398, 0.01
    %v777 = vmul.f32 %v403, 0.01
    %v778 = vmul.f32 %v408, 0.01
    %v779 = vmul.f32 %v413, 0.01
    %v780 = vmul.f32 %v418, 0.01
    %v781 = vmul.f32 %v423, 0.01
    %v782 = vmul.f32 %v428, 0.01
    %v783 = vmul.f32 %v433, 0.01
    %v784 = vmul.f32 %v438, 0.01
    %v785 = vmul.f32 %v443, 0.01
    %v786 = vmul.f32 %v448, 0.01
    %v787 = vmul.f32 %v453, 0.01
    %v788 = vmul.f32 %v458, 0.01
    %v789 = vmul.f32 %v463, 0.01
    %v790 = vmul.f32 %v468, 0.01
    %v791 = vmul.f32 %v473, 0.01
    %v792 = vmul.f32 %v478, 0.01
    %v793 = vmul.f32 %v483, 0.01
    %v794 = vmul.f32 %v488, 0.01
    %v795 = vmul.f32 %v493, 0.01
    %v796 = vmul.f32 %v498, 0.01
    %v797 = vmul.f32 %v503, 0.01
    %v798 = vmul.f32 %v508, 0.01
    %v799 = vmul.f32 %v513, 0.01
    %v800 = vmul.f32 %v518, 0.01
    %v801 = vmul.f32 %v523, 0.01
    %v802 = vmul.f32 %v528, 0.01
    %v803 = vmul.f32 %v533, 0.01
    %v804 = vmul.f32 %v538, 0.01
    %v805 = vmul.f32 %v543, 0.01
    %v806 = vmul.f32 %v548, 0.01
    %v807 = vmul.f32 %v553, 0.01
    %v808 = vmul.f32 %v558, 0.01
    %v809 = vmul.f32 %v563, 0.01
    %v810 = vmul.f32 %v568, 0.01
    %v811 = vmul.f32 %v573, 0.01
    %v812 = vmul.f32 %v578, 0.01
    %v813 = vmul.f32 %v583, 0.01
    %v814 = vmul.f32 %v588, 0.01
    %v815 = vmul.f32 %v593, 0.01
    %v816 = vmul.f32 %v598, 0.01
    %v817 = vmul.f32 %v603, 0.01
    %v818 = vmul.f32 %v608, 0.01
    %v819 = vmul.f32 %v613, 0.01
    %v820 = vmul.f32 %v618, 0.01
    %v821 = vmul.f32 %v623, 0.01
    %v822 = vmul.f32 %v628, 0.01
    %v823 = vmul.f32 %v633, 0.01
    %v824 = vmul.f32 %v638, 0.01
    %v825 = vmul.f32 %v643, 0.01
    %v826 = vmul.f32 %v648, 0.01
    %v827 = vmul.f32 %v653, 0.01
    %v828 = vmul.f32 %v658, 0.01
    %v829 = vmul.f32 %v663, 0.01
    %v830 = vmul.f32 %v668, 0.01
    %v831 = vmul.f32 %v673, 0.01
    %v832 = vmul.f32 %v678, 0.01
    %v833 = vmul.f32 %v683, 0.01
    %v834 = vmul.f32 %v688, 0.01
    %v835 = vmul.f32 %v693, 0.01
    %v836 = vmul.f32 %v698, 0.01
    %v837 = vmul.f32 %v703, 0.01
    %v838 = vmul.f32 %v708, 0.01
    %v839 = vsel %vm711, %v393, %v775
    %v840 = vsel %vm712, %v398, %v776
    %v841 = vsel %vm713, %v403, %v777
    %v842 = vsel %vm714, %v408, %v778
    %v843 = vsel %vm715, %v413, %v779
    %v844 = vsel %vm716, %v418, %v780
    %v845 = vsel %vm717, %v423, %v781
    %v846 = vsel %vm718, %v428, %v782
    %v847 = vsel %vm719, %v433, %v783
    %v848 = vsel %vm720, %v438, %v784
    %v849 = vsel %vm721, %v443, %v785
    %v850 = vsel %vm722, %v448, %v786
    %v851 = vsel %vm723, %v453, %v787
    %v852 = vsel %vm724, %v458, %v788
    %v853 = vsel %vm725, %v463, %v789
    %v854 = vsel %vm726, %v468, %v790
    %v855 = vsel %vm727, %v473, %v791
    %v856 = vsel %vm728, %v478, %v792
    %v857 = vsel %vm729, %v483, %v793
    %v858 = vsel %vm730, %v488, %v794
    %v859 = vsel %vm731, %v493, %v795
    %v860 = vsel %vm732, %v498, %v796
    %v861 = vsel %vm733, %v503, %v797
    %v862 = vsel %vm734, %v508, %v798
    %v863 = vsel %vm735, %v513, %v799
    %v864 = vsel %vm736, %v518, %v800
    %v865 = vsel %vm737, %v523, %v801
    %v866 = vsel %vm738, %v528, %v802
    %v867 = vsel %vm739, %v533, %v803
    %v868 = vsel %vm740, %v538, %v804
    %v869 = vsel %vm741, %v543, %v805
    %v870 = vsel %vm742, %v548, %v806
    %v871 = vsel %vm743, %v553, %v807
    %v872 = vsel %vm744, %v558, %v808
    %v873 = vsel %vm745, %v563, %v809
    %v874 = vsel %vm746, %v568, %v810
    %v875 = vsel %vm747, %v573, %v811
    %v876 = vsel %vm748, %v578, %v812
    %v877 = vsel %vm749, %v583, %v813
    %v878 = vsel %vm750, %v588, %v814
    %v879 = vsel %vm751, %v593, %v815
    %v880 = vsel %vm752, %v598, %v816
    %v881 = vsel %vm753, %v603, %v817
    %v882 = vsel %vm754, %v608, %v818
    %v883 = vsel %vm755, %v613, %v819
    %v884 = vsel %vm756, %v618, %v820
    %v885 = vsel %vm757, %v623, %v821
    %v886 = vsel %vm758, %v628, %v822
    %v887 = vsel %vm759, %v633, %v823
    %v888 = vsel %vm760, %v638, %v824
    %v889 = vsel %vm761, %v643, %v825
    %v890 = vsel %vm762, %v648, %v826
    %v891 = vsel %vm763, %v653, %v827
    %v892 = vsel %vm764, %v658, %v828
    %v893 = vsel %vm765, %v663, %v829
    %v894 = vsel %vm766, %v668, %v830
    %v895 = vsel %vm767, %v673, %v831
    %v896 = vsel %vm768, %v678, %v832
    %v897 = vsel %vm769, %v683, %v833
    %v898 = vsel %vm770, %v688, %v834
    %v899 = vsel %vm771, %v693, %v835
    %v900 = vsel %vm772, %v698, %v836
    %v901 = vsel %vm773, %v703, %v837
    %v902 = vsel %vm774, %v708, %v838
    %v903 = vpack.c.bf16 %v840, %v839
    %v904 = vpack.c.bf16 %v842, %v841
    %v905 = vpack.c.bf16 %v844, %v843
    %v906 = vpack.c.bf16 %v846, %v845
    %v907 = vpack.c.bf16 %v848, %v847
    %v908 = vpack.c.bf16 %v850, %v849
    %v909 = vpack.c.bf16 %v852, %v851
    %v910 = vpack.c.bf16 %v854, %v853
    %v911 = vpack.c.bf16 %v856, %v855
    %v912 = vpack.c.bf16 %v858, %v857
    %v913 = vpack.c.bf16 %v860, %v859
    %v914 = vpack.c.bf16 %v862, %v861
    %v915 = vpack.c.bf16 %v864, %v863
    %v916 = vpack.c.bf16 %v866, %v865
    %v917 = vpack.c.bf16 %v868, %v867
    %v918 = vpack.c.bf16 %v870, %v869
    %v935 = vunpack.c.l.b16 %v903
    %v936 = vunpack.c.h.b16 %v903
    %v937 = vunpack.c.l.b16 %v904
    %v938 = vunpack.c.h.b16 %v904
    %v939 = vunpack.c.l.b16 %v905
    %v940 = vunpack.c.h.b16 %v905
    %v941 = vunpack.c.l.b16 %v906
    %v942 = vunpack.c.h.b16 %v906
    %v943 = vunpack.c.l.b16 %v907
    %v944 = vunpack.c.h.b16 %v907
    %v945 = vunpack.c.l.b16 %v908
    %v946 = vunpack.c.h.b16 %v908
    %v947 = vunpack.c.l.b16 %v909
    %v948 = vunpack.c.h.b16 %v909
    %v949 = vunpack.c.l.b16 %v910
    %v950 = vunpack.c.h.b16 %v910
    %v951 = vunpack.c.l.b16 %v911
    %v952 = vunpack.c.h.b16 %v911
    %v953 = vunpack.c.l.b16 %v912
    %v954 = vunpack.c.h.b16 %v912
    %v955 = vunpack.c.l.b16 %v913
    %v956 = vunpack.c.h.b16 %v913
    %v957 = vunpack.c.l.b16 %v914
    %v958 = vunpack.c.h.b16 %v914
    %v959 = vunpack.c.l.b16 %v915
    %v960 = vunpack.c.h.b16 %v915
    %v961 = vunpack.c.l.b16 %v916
    %v962 = vunpack.c.h.b16 %v916
    %v963 = vunpack.c.l.b16 %v917
    %v964 = vunpack.c.h.b16 %v917
    %v965 = vunpack.c.l.b16 %v918
    %v966 = vunpack.c.h.b16 %v918
    %v967 = vpack.c.b16 %v935, %v935
    %v968 = vpack.c.b16 %v936, %v936
    %v969 = vpack.c.b16 %v937, %v937
    %v970 = vpack.c.b16 %v938, %v938
    %v971 = vpack.c.b16 %v939, %v939
    %v972 = vpack.c.b16 %v940, %v940
    %v973 = vpack.c.b16 %v941, %v941
    %v974 = vpack.c.b16 %v942, %v942
    %v975 = vpack.c.b16 %v943, %v943
    %v976 = vpack.c.b16 %v944, %v944
    %v977 = vpack.c.b16 %v945, %v945
    %v978 = vpack.c.b16 %v946, %v946
    %v979 = vpack.c.b16 %v947, %v947
    %v980 = vpack.c.b16 %v948, %v948
    %v981 = vpack.c.b16 %v949, %v949
    %v982 = vpack.c.b16 %v950, %v950
    %v983 = vpack.c.b16 %v951, %v951
    %v984 = vpack.c.b16 %v952, %v952
    %v985 = vpack.c.b16 %v953, %v953
    %v986 = vpack.c.b16 %v954, %v954
    %v987 = vpack.c.b16 %v955, %v955
    %v988 = vpack.c.b16 %v956, %v956
    %v989 = vpack.c.b16 %v957, %v957
    %v990 = vpack.c.b16 %v958, %v958
    %v991 = vpack.c.b16 %v959, %v959
    %v992 = vpack.c.b16 %v960, %v960
    %v993 = vpack.c.b16 %v961, %v961
    %v994 = vpack.c.b16 %v962, %v962
    %v995 = vpack.c.b16 %v963, %v963
    %v996 = vpack.c.b16 %v964, %v964
    %v997 = vpack.c.b16 %v965, %v965
    %v998 = vpack.c.b16 %v966, %v966
    %1031 = vst [vmem:[#allocation2] sm:$0xf] %v967
    %1032 = vst [vmem:[#allocation2 + $0x4] sm:$0xf] %v968
    %1033 = vst [vmem:[#allocation2 + $0x8] sm:$0xf] %v969
    %1034 = vst [vmem:[#allocation2 + $0xc] sm:$0xf] %v970
    %1035 = vst [vmem:[#allocation2 + $0x10] sm:$0xf] %v971
    %1036 = vst [vmem:[#allocation2 + $0x14] sm:$0xf] %v972
    %1037 = vst [vmem:[#allocation2 + $0x18] sm:$0xf] %v973
    %1038 = vst [vmem:[#allocation2 + $0x1c] sm:$0xf] %v974
    %1039 = vst [vmem:[#allocation2 + $0x20] sm:$0xf] %v975
    %1040 = vst [vmem:[#allocation2 + $0x24] sm:$0xf] %v976
    %1041 = vst [vmem:[#allocation2 + $0x28] sm:$0xf] %v977
    %1042 = vst [vmem:[#allocation2 + $0x2c] sm:$0xf] %v978
    %1043 = vst [vmem:[#allocation2 + $0x30] sm:$0xf] %v979
    %1044 = vst [vmem:[#allocation2 + $0x34] sm:$0xf] %v980
    %1045 = vst [vmem:[#allocation2 + $0x38] sm:$0xf] %v981
    %1046 = vst [vmem:[#allocation2 + $0x3c] sm:$0xf] %v982
    %1047 = vst [vmem:[#allocation2 + $0x40] sm:$0xf] %v983
    %1048 = vst [vmem:[#allocation2 + $0x44] sm:$0xf] %v984
    %1049 = vst [vmem:[#allocation2 + $0x48] sm:$0xf] %v985
    %1050 = vst [vmem:[#allocation2 + $0x4c] sm:$0xf] %v986
    %1051 = vst [vmem:[#allocation2 + $0x50] sm:$0xf] %v987
    %1052 = vst [vmem:[#allocation2 + $0x54] sm:$0xf] %v988
    %1053 = vst [vmem:[#allocation2 + $0x58] sm:$0xf] %v989
    %1054 = vst [vmem:[#allocation2 + $0x5c] sm:$0xf] %v990
    %1055 = vst [vmem:[#allocation2 + $0x60] sm:$0xf] %v991
    %1056 = vst [vmem:[#allocation2 + $0x64] sm:$0xf] %v992
    %1057 = vst [vmem:[#allocation2 + $0x68] sm:$0xf] %v993
    %1058 = vst [vmem:[#allocation2 + $0x6c] sm:$0xf] %v994
    %1059 = vst [vmem:[#allocation2 + $0x70] sm:$0xf] %v995
    %1060 = vst [vmem:[#allocation2 + $0x74] sm:$0xf] %v996
    %1061 = vst [vmem:[#allocation2 + $0x78] sm:$0xf] %v997
    %1062 = vst [vmem:[#allocation2 + $0x7c] sm:$0xf] %v998
    %v1063 = vpack.c.bf16 %v872, %v871
    %v1064 = vpack.c.bf16 %v874, %v873
    %v1065 = vpack.c.bf16 %v876, %v875
    %v1066 = vpack.c.bf16 %v878, %v877
    %v1067 = vpack.c.bf16 %v880, %v879
    %v1068 = vpack.c.bf16 %v882, %v881
    %v1069 = vpack.c.bf16 %v884, %v883
    %v1070 = vpack.c.bf16 %v886, %v885
    %v1071 = vpack.c.bf16 %v888, %v887
    %v1072 = vpack.c.bf16 %v890, %v889
    %v1073 = vpack.c.bf16 %v892, %v891
    %v1074 = vpack.c.bf16 %v894, %v893
    %v1075 = vpack.c.bf16 %v896, %v895
    %v1076 = vpack.c.bf16 %v898, %v897
    %v1077 = vpack.c.bf16 %v900, %v899
    %v1078 = vpack.c.bf16 %v902, %v901
    %v1079 = vld [vmem:[%s4] sm:$0xf]
    %v1080 = vld [vmem:[%s4 + $0x4] sm:$0xf]
    %v1081 = vld [vmem:[%s4 + $0x8] sm:$0xf]
    %v1082 = vld [vmem:[%s4 + $0xc] sm:$0xf]
    %v1083 = vld [vmem:[%s4 + $0x10] sm:$0xf]
    %v1084 = vld [vmem:[%s4 + $0x14] sm:$0xf]
    %v1085 = vld [vmem:[%s4 + $0x18] sm:$0xf]
    %v1086 = vld [vmem:[%s4 + $0x1c] sm:$0xf]
    %v1087 = vld [vmem:[%s4 + $0x20] sm:$0xf]
    %v1088 = vld [vmem:[%s4 + $0x24] sm:$0xf]
    %v1089 = vld [vmem:[%s4 + $0x28] sm:$0xf]
    %v1090 = vld [vmem:[%s4 + $0x2c] sm:$0xf]
    %v1091 = vld [vmem:[%s4 + $0x30] sm:$0xf]
    %v1092 = vld [vmem:[%s4 + $0x34] sm:$0xf]
    %v1093 = vld [vmem:[%s4 + $0x38] sm:$0xf]
    %v1094 = vld [vmem:[%s4 + $0x3c] sm:$0xf]
    %v1095 = vld [vmem:[%s5] sm:$0x1]
    %v1097 = vlaneseq
    %v1098 = vshrl.u32 %v1097, 7
    %v1099 = vsub.s32 0, %v1098
    %v1100 = vrot.slane %v1095, %v1099
    %v1118 = vunpack.c.l.b16 %v1079
    %v1119 = vunpack.c.l.b16 %v1080
    %v1120 = vunpack.c.l.b16 %v1081
    %v1121 = vunpack.c.l.b16 %v1082
    %v1122 = vunpack.c.l.b16 %v1083
    %v1123 = vunpack.c.l.b16 %v1084
    %v1124 = vunpack.c.l.b16 %v1085
    %v1125 = vunpack.c.l.b16 %v1086
    %v1126 = vunpack.c.l.b16 %v1087
    %v1127 = vunpack.c.l.b16 %v1088
    %v1128 = vunpack.c.l.b16 %v1089
    %v1129 = vunpack.c.l.b16 %v1090
    %v1130 = vunpack.c.l.b16 %v1091
    %v1131 = vunpack.c.l.b16 %v1092
    %v1132 = vunpack.c.l.b16 %v1093
    %v1133 = vunpack.c.l.b16 %v1094
    %v1134 = vpack.c.b16 %v1119, %v1118
    %v1135 = vpack.c.b16 %v1121, %v1120
    %v1136 = vpack.c.b16 %v1123, %v1122
    %v1137 = vpack.c.b16 %v1125, %v1124
    %v1138 = vpack.c.b16 %v1127, %v1126
    %v1139 = vpack.c.b16 %v1129, %v1128
    %v1140 = vpack.c.b16 %v1131, %v1130
    %v1141 = vpack.c.b16 %v1133, %v1132
    %1150 = vmatprep.subr.bf16.mxu0 0
    %1151 = vmatpush1.bf16.msra.mxu0 %v1134
    %1152 = vmatprep.subr.bf16.mxu0 0
    %1153 = vmatpush1.bf16.msra.mxu0 %v1135
    %1154 = vmatprep.subr.bf16.mxu0 0
    %1155 = vmatpush1.bf16.msra.mxu0 %v1136
    %1156 = vmatprep.subr.bf16.mxu0 0
    %1157 = vmatpush1.bf16.msra.mxu0 %v1137
    %1158 = vmatprep.subr.bf16.mxu0 0
    %1159 = vmatpush1.bf16.msra.mxu0 %v1138
    %1160 = vmatprep.subr.bf16.mxu0 0
    %1161 = vmatpush1.bf16.msra.mxu0 %v1139
    %1162 = vmatprep.subr.bf16.mxu0 0
    %1163 = vmatpush1.bf16.msra.mxu0 %v1140
    %1164 = vmatprep.subr.bf16.mxu0 0
    %1165 = vmatpush1.bf16.msra.mxu0 %v1141
    %1166 = vmatprep.subr.bf16.mxu0 0
    %1167 = vmatpush1.bf16.msra.mxu0 0
    %1168 = vmatprep.subr.bf16.mxu0 0
    %1169 = vmatpush1.bf16.msra.mxu0 0
    %1170 = vmatprep.subr.bf16.mxu0 0
    %1171 = vmatpush1.bf16.msra.mxu0 0
    %1172 = vmatprep.subr.bf16.mxu0 0
    %1173 = vmatpush1.bf16.msra.mxu0 0
    %1174 = vmatprep.subr.bf16.mxu0 0
    %1175 = vmatpush1.bf16.msra.mxu0 0
    %1176 = vmatprep.subr.bf16.mxu0 0
    %1177 = vmatpush1.bf16.msra.mxu0 0
    %1178 = vmatprep.subr.bf16.mxu0 0
    %1179 = vmatpush1.bf16.msra.mxu0 0
    %1180 = vmatprep.subr.bf16.mxu0 0
    %1181 = vmatpush1.bf16.msra.mxu0 0
    %1182 = vmatprep.mubr.bf16.mxu0 0
    %1183 = vmatmul.mubr.bf16.gmra.mrb[0].mxu0 %v1063
    %v1184 = vpop.f32.mrb[0].mxu0
    %v1185 = vadd.f32 %v1100, %v1184
    %v1186 = vpop.f32.mrb[0].mxu0
    %v1187 = vpop.f32.mrb[0].mxu0
    %v1188 = vadd.f32 %v1100, %v1187
    %v1189 = vpop.f32.mrb[0].mxu0
    %1190 = vmatprep.mubr.bf16.mxu0 0
    %1191 = vmatmul.mubr.bf16.gmra.mrb[0].mxu0 %v1064
    %v1192 = vpop.f32.mrb[0].mxu0
    %v1193 = vadd.f32 %v1100, %v1192
    %v1194 = vpop.f32.mrb[0].mxu0
    %v1195 = vpop.f32.mrb[0].mxu0
    %v1196 = vadd.f32 %v1100, %v1195
    %v1197 = vpop.f32.mrb[0].mxu0
    %1198 = vmatprep.mubr.bf16.mxu0 0
    %1199 = vmatmul.mubr.bf16.gmra.mrb[0].mxu0 %v1065
    %v1200 = vpop.f32.mrb[0].mxu0
    %v1201 = vadd.f32 %v1100, %v1200
    %v1202 = vpop.f32.mrb[0].mxu0
    %v1203 = vpop.f32.mrb[0].mxu0
    %v1204 = vadd.f32 %v1100, %v1203
    %v1205 = vpop.f32.mrb[0].mxu0
    %1206 = vmatprep.mubr.bf16.mxu0 0
    %1207 = vmatmul.mubr.bf16.gmra.mrb[0].mxu0 %v1066
    %v1208 = vpop.f32.mrb[0].mxu0
    %v1209 = vadd.f32 %v1100, %v1208
    %v1210 = vpop.f32.mrb[0].mxu0
    %v1211 = vpop.f32.mrb[0].mxu0
    %v1212 = vadd.f32 %v1100, %v1211
    %v1213 = vpop.f32.mrb[0].mxu0
    %1214 = vmatprep.mubr.bf16.mxu0 0
    %1215 = vmatmul.mubr.bf16.gmra.mrb[0].mxu0 %v1067
    %v1216 = vpop.f32.mrb[0].mxu0
    %v1217 = vadd.f32 %v1100, %v1216
    %v1218 = vpop.f32.mrb[0].mxu0
    %v1219 = vpop.f32.mrb[0].mxu0
    %v1220 = vadd.f32 %v1100, %v1219
    %v1221 = vpop.f32.mrb[0].mxu0
    %1222 = vmatprep.mubr.bf16.mxu0 0
    %1223 = vmatmul.mubr.bf16.gmra.mrb[0].mxu0 %v1068
    %v1224 = vpop.f32.mrb[0].mxu0
    %v1225 = vadd.f32 %v1100, %v1224
    %v1226 = vpop.f32.mrb[0].mxu0
    %v1227 = vpop.f32.mrb[0].mxu0
    %v1228 = vadd.f32 %v1100, %v1227
    %v1229 = vpop.f32.mrb[0].mxu0
    %1230 = vmatprep.mubr.bf16.mxu0 0
    %1231 = vmatmul.mubr.bf16.gmra.mrb[0].mxu0 %v1069
    %v1232 = vpop.f32.mrb[0].mxu0
    %v1233 = vadd.f32 %v1100, %v1232
    %v1234 = vpop.f32.mrb[0].mxu0
    %v1235 = vpop.f32.mrb[0].mxu0
    %v1236 = vadd.f32 %v1100, %v1235
    %v1237 = vpop.f32.mrb[0].mxu0
    %1238 = vmatprep.mubr.bf16.mxu0 0
    %1239 = vmatmul.mubr.bf16.gmra.mrb[0].mxu0 %v1070
    %v1240 = vpop.f32.mrb[0].mxu0
    %v1241 = vadd.f32 %v1100, %v1240
    %v1242 = vpop.f32.mrb[0].mxu0
    %v1243 = vpop.f32.mrb[0].mxu0
    %v1244 = vadd.f32 %v1100, %v1243
    %v1245 = vpop.f32.mrb[0].mxu0
    %1246 = vmatprep.mubr.bf16.mxu0 0
    %1247 = vmatmul.mubr.bf16.gmra.mrb[0].mxu0 %v1071
    %v1248 = vpop.f32.mrb[0].mxu0
    %v1249 = vadd.f32 %v1100, %v1248
    %v1250 = vpop.f32.mrb[0].mxu0
    %v1251 = vpop.f32.mrb[0].mxu0
    %v1252 = vadd.f32 %v1100, %v1251
    %v1253 = vpop.f32.mrb[0].mxu0
    %1254 = vmatprep.mubr.bf16.mxu0 0
    %1255 = vmatmul.mubr.bf16.gmra.mrb[0].mxu0 %v1072
    %v1256 = vpop.f32.mrb[0].mxu0
    %v1257 = vadd.f32 %v1100, %v1256
    %v1258 = vpop.f32.mrb[0].mxu0
    %v1259 = vpop.f32.mrb[0].mxu0
    %v1260 = vadd.f32 %v1100, %v1259
    %v1261 = vpop.f32.mrb[0].mxu0
    %1262 = vmatprep.mubr.bf16.mxu0 0
    %1263 = vmatmul.mubr.bf16.gmra.mrb[0].mxu0 %v1073
    %v1264 = vpop.f32.mrb[0].mxu0
    %v1265 = vadd.f32 %v1100, %v1264
    %v1266 = vpop.f32.mrb[0].mxu0
    %v1267 = vpop.f32.mrb[0].mxu0
    %v1268 = vadd.f32 %v1100, %v1267
    %v1269 = vpop.f32.mrb[0].mxu0
    %1270 = vmatprep.mubr.bf16.mxu0 0
    %1271 = vmatmul.mubr.bf16.gmra.mrb[0].mxu0 %v1074
    %v1272 = vpop.f32.mrb[0].mxu0
    %v1273 = vadd.f32 %v1100, %v1272
    %v1274 = vpop.f32.mrb[0].mxu0
    %v1275 = vpop.f32.mrb[0].mxu0
    %v1276 = vadd.f32 %v1100, %v1275
    %v1277 = vpop.f32.mrb[0].mxu0
    %1278 = vmatprep.mubr.bf16.mxu0 0
    %1279 = vmatmul.mubr.bf16.gmra.mrb[0].mxu0 %v1075
    %v1280 = vpop.f32.mrb[0].mxu0
    %v1281 = vadd.f32 %v1100, %v1280
    %v1282 = vpop.f32.mrb[0].mxu0
    %v1283 = vpop.f32.mrb[0].mxu0
    %v1284 = vadd.f32 %v1100, %v1283
    %v1285 = vpop.f32.mrb[0].mxu0
    %1286 = vmatprep.mubr.bf16.mxu0 0
    %1287 = vmatmul.mubr.bf16.gmra.mrb[0].mxu0 %v1076
    %v1288 = vpop.f32.mrb[0].mxu0
    %v1289 = vadd.f32 %v1100, %v1288
    %v1290 = vpop.f32.mrb[0].mxu0
    %v1291 = vpop.f32.mrb[0].mxu0
    %v1292 = vadd.f32 %v1100, %v1291
    %v1293 = vpop.f32.mrb[0].mxu0
    %1294 = vmatprep.mubr.bf16.mxu0 0
    %1295 = vmatmul.mubr.bf16.gmra.mrb[0].mxu0 %v1077
    %v1296 = vpop.f32.mrb[0].mxu0
    %v1297 = vadd.f32 %v1100, %v1296
    %v1298 = vpop.f32.mrb[0].mxu0
    %v1299 = vpop.f32.mrb[0].mxu0
    %v1300 = vadd.f32 %v1100, %v1299
    %v1301 = vpop.f32.mrb[0].mxu0
    %1302 = vmatprep.mubr.bf16.mxu0 0
    %1303 = vmatmul.mubr.bf16.gmra.mrb[0].mxu0 %v1078
    %v1304 = vpop.f32.mrb[0].mxu0
    %v1305 = vadd.f32 %v1100, %v1304
    %v1306 = vpop.f32.mrb[0].mxu0
    %v1307 = vpop.f32.mrb[0].mxu0
    %v1308 = vadd.f32 %v1100, %v1307
    %v1309 = vpop.f32.mrb[0].mxu0
    %1310 = vdwg.mxu0
    %1311 = vst [vmem:[#allocation4] sm:$0xff] %v1185
    %1312 = vst [vmem:[#allocation4 + $0x8] sm:$0xff] %v1188
    %1313 = vst [vmem:[#allocation4 + $0x10] sm:$0xff] %v1193
    %1314 = vst [vmem:[#allocation4 + $0x18] sm:$0xff] %v1196
    %1315 = vst [vmem:[#allocation4 + $0x20] sm:$0xff] %v1201
    %1316 = vst [vmem:[#allocation4 + $0x28] sm:$0xff] %v1204
    %1317 = vst [vmem:[#allocation4 + $0x30] sm:$0xff] %v1209
    %1318 = vst [vmem:[#allocation4 + $0x38] sm:$0xff] %v1212
    %1319 = vst [vmem:[#allocation4 + $0x40] sm:$0xff] %v1217
    %1320 = vst [vmem:[#allocation4 + $0x48] sm:$0xff] %v1220
    %1321 = vst [vmem:[#allocation4 + $0x50] sm:$0xff] %v1225
    %1322 = vst [vmem:[#allocation4 + $0x58] sm:$0xff] %v1228
    %1323 = vst [vmem:[#allocation4 + $0x60] sm:$0xff] %v1233
    %1324 = vst [vmem:[#allocation4 + $0x68] sm:$0xff] %v1236
    %1325 = vst [vmem:[#allocation4 + $0x70] sm:$0xff] %v1241
    %1326 = vst [vmem:[#allocation4 + $0x78] sm:$0xff] %v1244
    %1327 = vst [vmem:[#allocation4 + $0x80] sm:$0xff] %v1249
    %1328 = vst [vmem:[#allocation4 + $0x88] sm:$0xff] %v1252
    %1329 = vst [vmem:[#allocation4 + $0x90] sm:$0xff] %v1257
    %1330 = vst [vmem:[#allocation4 + $0x98] sm:$0xff] %v1260
    %1331 = vst [vmem:[#allocation4 + $0xa0] sm:$0xff] %v1265
    %1332 = vst [vmem:[#allocation4 + $0xa8] sm:$0xff] %v1268
    %1333 = vst [vmem:[#allocation4 + $0xb0] sm:$0xff] %v1273
    %1334 = vst [vmem:[#allocation4 + $0xb8] sm:$0xff] %v1276
    %1335 = vst [vmem:[#allocation4 + $0xc0] sm:$0xff] %v1281
    %1336 = vst [vmem:[#allocation4 + $0xc8] sm:$0xff] %v1284
    %1337 = vst [vmem:[#allocation4 + $0xd0] sm:$0xff] %v1289
    %1338 = vst [vmem:[#allocation4 + $0xd8] sm:$0xff] %v1292
    %1339 = vst [vmem:[#allocation4 + $0xe0] sm:$0xff] %v1297
    %1340 = vst [vmem:[#allocation4 + $0xe8] sm:$0xff] %v1300
    %1341 = vst [vmem:[#allocation4 + $0xf0] sm:$0xff] %v1305
    %1342 = vst [vmem:[#allocation4 + $0xf8] sm:$0xff] %v1308
    // Predicated region
    $region26: #{tpu_custom_call.1} parent=1 // pred_check
      _
    $region27: #{tpu_custom_call.1} parent=1 // pred_check_branch
      %1344 = sbr.rel (0) target = $region29
    $region28: #{tpu_custom_call.1} parent=1 // pred_region
      %s1346 = ssub.s32 2048, 2048
      %1347 = vsyncadd [#allocation3], %s1346
      %s1348 = sshll.u32 [#allocation2], 4
      %s1349 = int_to_ptr.vmem [resolvable:$true] %s1348
      %1354 = dma.vmem_to_hbm [thread:$0]  %s1349, 2048, %s6, [#allocation3], 64, 64, 4
    $region29: #{tpu_custom_call.1} parent=1 // pred_fallthru
      _
    // Predicated region
    $region30: #{tpu_custom_call.1} parent=1 // pred_check
      _
    $region31: #{tpu_custom_call.1} parent=1 // pred_check_branch
      %1356 = sbr.rel (0) target = $region33
    $region32: #{tpu_custom_call.1} parent=1 // pred_region
      %s1358 = ssub.s32 4096, 4096
      %1359 = vsyncadd [#allocation5], %s1358
      %s1360 = sshll.u32 [#allocation4], 4
      %s1361 = int_to_ptr.vmem [resolvable:$true] %s1360
      %1366 = dma.vmem_to_hbm [thread:$0]  %s1361, 4096, %s7, [#allocation5], 128, 128, 8
    $region33: #{tpu_custom_call.1} parent=1 // pred_fallthru
      _
    // Predicated region
    $region34: #{tpu_custom_call.1} parent=1 // pred_check
      _
    $region35: #{tpu_custom_call.1} parent=1 // pred_check_branch
      %1368 = sbr.rel (0) target = $region37
    $region36: #{tpu_custom_call.1} parent=1 // pred_region
      %1369 = dma.done [#allocation3], 2048
    $region37: #{tpu_custom_call.1} parent=1 // pred_fallthru
      _
    // Predicated region
    $region38: #{tpu_custom_call.1} parent=1 // pred_check
      _
    $region39: #{tpu_custom_call.1} parent=1 // pred_check_branch
      %1371 = sbr.rel (0) target = $region41
    $region40: #{tpu_custom_call.1} parent=1 // pred_region
      %1372 = dma.done [#allocation5], 4096
    $region41: #{tpu_custom_call.1} parent=1 // pred_fallthru
      _
    %1373 = vsyncpa [#allocation3], 1
    %1374 = vsyncpa [#allocation5], 1

</llo_original>
